<compile_context>
chip_gen: v6e
topology: v6e:2x2x1
jax: 0.10.0
libtpu: 0.0.40
codegen_flags: <defaults>
</compile_context>

<pallas_src>
import math

import jax
import jax.numpy as jnp
from jax.experimental import pallas as pl
from jax.experimental.pallas import tpu as pltpu


def _patch_applier_kernel(img_ref, adv_ref, out_ref):
    img = img_ref[...]
    adv = adv_ref[...]
    # torch.where(adv == 0, img, adv)
    out_ref[...] = jnp.where(adv == 0, img, adv)


_GEN_PARAMS_CACHE = None


def _generation_params():
    """(tile_bytes_per_buffer, vmem_limit_bytes_or_None), tuned per TPU gen."""
    global _GEN_PARAMS_CACHE
    if _GEN_PARAMS_CACHE is not None:
        return _GEN_PARAMS_CACHE

    tile_bytes = 2 * 1024 * 1024        # conservative default (fits every gen)
    vmem_limit = None
    try:
        info = pltpu.get_tpu_info()
        vmem_cap = getattr(info, "vmem_capacity_bytes", None)
    except Exception:  # non-TPU / interpret fallback
        vmem_cap = None

    if vmem_cap is not None:
        if vmem_cap <= 96 * 1024 * 1024:
            # v7x-class: 64 MiB VMEM per TC, ~3.2 TB/s HBM -> bigger blocks to
            # amortize the ~0.35 us per-grid-step overhead.
            tile_bytes = 6 * 1024 * 1024            # 6 bufs (2-in/1-out, dbl-buffered) = 36 MiB
            vmem_limit = 48 * 1024 * 1024           # explicit: above the 32 MiB default scope
        else:
            # v5e / v6e: 128 MiB physical VMEM.
            tile_bytes = 4 * 1024 * 1024            # 6 bufs = 24 MiB
            vmem_limit = 32 * 1024 * 1024           # covers v5e's 16 MiB default scope

    _GEN_PARAMS_CACHE = (tile_bytes, vmem_limit)
    return _GEN_PARAMS_CACHE


def _largest_lane_divisor(n: int) -> int:
    """Largest multiple of 128 (<= 1024) dividing n, or 0 if none."""
    for cand in range(1024, 0, -128):
        if n % cand == 0:
            return cand
    return 0


def _run_select_kernel_2d(img_flat, adv_flat, total, lane, dtype):
    rows = total // lane
    itemsize = jnp.dtype(dtype).itemsize
    tile_bytes, vmem_limit = _generation_params()

    # Row-tile multiple of 32 covers native sublane packing for f32 (8),
    # bf16 (16) and int8/fp8 (32).
    ROW_ALIGN = 32
    target_rows = max(ROW_ALIGN, (tile_bytes // (lane * itemsize)) // ROW_ALIGN * ROW_ALIGN)

    if rows <= target_rows:
        # Single block; block_shape == full array dims, so any row count is legal.
        tile_rows = rows
        grid = (1,)
    else:
        tile_rows = target_rows
        # Ragged final block: Pallas masks out-of-bounds output writes, so no
        # padding of the inputs and no output slice is needed.
        grid = (pl.cdiv(rows, tile_rows),)

    img2d = img_flat.reshape(rows, lane)
    adv2d = adv_flat.reshape(rows, lane)

    spec = pl.BlockSpec((tile_rows, lane), lambda i: (i, 0))

    cp_kwargs = dict(dimension_semantics=("parallel",))
    if vmem_limit is not None:
        cp_kwargs["vmem_limit_bytes"] = vmem_limit

    out2d = pl.pallas_call(
        _patch_applier_kernel,
        out_shape=jax.ShapeDtypeStruct((rows, lane), dtype),
        grid_spec=pl.GridSpec(
            grid=grid,
            in_specs=[spec, spec],
            out_specs=spec,
        ),
        # Note: input_output_aliases={0: 0} would reuse img's HBM buffer, but
        # only pays off with donated inputs at the jit boundary; left off here.
        compiler_params=pltpu.CompilerParams(**cp_kwargs),
    )(img2d, adv2d)

    return out2d.reshape(-1)


def patch_applier(img_batch: jax.Array, adv_batch: jax.Array) -> jax.Array:
    """Applies adversarial patch: where adv==0 keep image, else take patch."""
    assert img_batch.shape == adv_batch.shape, "shapes must match (no broadcast needed)"
    assert img_batch.dtype == adv_batch.dtype, "dtypes must match"
    orig_shape = img_batch.shape
    dtype = img_batch.dtype

    total = math.prod(orig_shape)
    if total == 0:
        return img_batch

    img_flat = img_batch.reshape(-1)
    adv_flat = adv_batch.reshape(-1)

    lane = _largest_lane_divisor(total)
    if lane:
        # Fast path (typical NCHW batches): no padding, no output slice.
        out_flat = _run_select_kernel_2d(img_flat, adv_flat, total, lane, dtype)
    else:
        # total is not a multiple of 128: run the kernel on the 128-aligned
        # prefix and handle the tiny (<128 element) tail with plain jnp.where.
        main = (total // 128) * 128
        if main == 0:
            out_flat = jnp.where(adv_flat == 0, img_flat, adv_flat)
        else:
            main_lane = _largest_lane_divisor(main)
            out_main = _run_select_kernel_2d(
                img_flat[:main], adv_flat[:main], main, main_lane, dtype)
            tail = jnp.where(adv_flat[main:] == 0, img_flat[main:], adv_flat[main:])
            out_flat = jnp.concatenate([out_main, tail])

    return out_flat.reshape(orig_shape)


if __name__ == "__main__":
    key = jax.random.PRNGKey(0)
    k_img, k_adv, k_mask, k2_img, k2_adv = jax.random.split(key, 5)

    # NCHW, small shapes (lane-aligned path)
    B, C, H, W = 2, 4, 16, 16
    img_batch = jax.random.uniform(k_img, (B, C, H, W), dtype=jnp.float32)
    # adv_batch is exactly zero outside a "patch" region
    adv_vals = jax.random.uniform(k_adv, (B, C, H, W), dtype=jnp.float32) + 0.1
    patch_mask = (jax.random.uniform(k_mask, (B, 1, H, W)) > 0.5).astype(jnp.float32)
    adv_batch = adv_vals * patch_mask  # zeros where mask==0

    out = patch_applier(img_batch, adv_batch)
    out = jax.block_until_ready(out)

    ref = jnp.where(adv_batch == 0, img_batch, adv_batch)
    assert out.shape == img_batch.shape
    assert jnp.allclose(out, ref), "mismatch vs reference (aligned path)"

    # Misaligned element count (exercises prefix-kernel + tail path)
    shape2 = (3, 3, 5, 7)  # 315 elements, not a multiple of 128
    img2 = jax.random.uniform(k2_img, shape2, dtype=jnp.float32)
    adv2 = jax.random.uniform(k2_adv, shape2, dtype=jnp.float32)
    adv2 = jnp.where(adv2 > 0.5, adv2, jnp.zeros_like(adv2))
    out2 = jax.block_until_ready(patch_applier(img2, adv2))
    ref2 = jnp.where(adv2 == 0, img2, adv2)
    assert out2.shape == shape2
    assert jnp.allclose(out2, ref2), "mismatch vs reference (tail path)"

    print("KERNEL_OK")
</pallas_src>

<mosaic_0001>
module attributes {stable_mosaic.version = 11 : i64} {
  func.func @_patch_applier_kernel(%arg0: i32, %arg1: memref<2x1024xf32, #tpu.memory_space<vmem>>, %arg2: memref<2x1024xf32, #tpu.memory_space<vmem>>, %arg3: memref<2x1024xf32, #tpu.memory_space<vmem>>) attributes {dimension_semantics = [#tpu.dimension_semantics<parallel>], iteration_bounds = array<i64: 1>, scalar_prefetch = 0 : i64, scratch_operands = 0 : i64, tpu.core_type = #tpu.core_type<tc>, window_params = [{transform_indices = @transform_0, window_bounds = array<i64: 2, 1024>}, {transform_indices = @transform_1, window_bounds = array<i64: 2, 1024>}, {transform_indices = @transform_2, window_bounds = array<i64: 2, 1024>}]} {
    %c0 = arith.constant 0 : index
    %c0_0 = arith.constant 0 : index
    %0 = vector.load %arg1[%c0, %c0_0] : memref<2x1024xf32, #tpu.memory_space<vmem>>, vector<2x1024xf32>
    %c0_1 = arith.constant 0 : index
    %c0_2 = arith.constant 0 : index
    %1 = vector.load %arg2[%c0_1, %c0_2] : memref<2x1024xf32, #tpu.memory_space<vmem>>, vector<2x1024xf32>
    %cst = arith.constant 0.000000e+00 : f32
    %2 = vector.broadcast %cst : f32 to vector<2x1024xf32>
    %3 = arith.cmpf oeq, %1, %2 : vector<2x1024xf32>
    %4 = arith.select %3, %0, %1 : vector<2x1024xi1>, vector<2x1024xf32>
    %c0_3 = arith.constant 0 : index
    %c0_4 = arith.constant 0 : index
    %5 = vector.load %arg3[%c0_3, %c0_4] : memref<2x1024xf32, #tpu.memory_space<vmem>>, vector<2x1024xf32>
    tpu.vector_store %arg3[%c0_3, %c0_4], %4 {strides = array<i32>} : memref<2x1024xf32, #tpu.memory_space<vmem>>, vector<2x1024xf32>,
    return
  }
  func.func @transform_0(%arg0: i32) -> (i32, i32) {
    %c0_i32 = arith.constant 0 : i32
    %c0_i32_0 = arith.constant 0 : i32
    return %arg0, %c0_i32 : i32, i32
  }
  func.func @transform_1(%arg0: i32) -> (i32, i32) {
    %c0_i32 = arith.constant 0 : i32
    %c0_i32_0 = arith.constant 0 : i32
    return %arg0, %c0_i32 : i32, i32
  }
  func.func @transform_2(%arg0: i32) -> (i32, i32) {
    %c0_i32 = arith.constant 0 : i32
    %c0_i32_0 = arith.constant 0 : i32
    return %arg0, %c0_i32 : i32, i32
  }
}

</mosaic_0001>

<llo_original>
// kernel: tpu_custom_call.1
$region0: #{tpu_custom_call.1}
  #allocation0 [shape = 'u32[]', space=smem, size = 0x4, offset = 0x4, fixed_abs, tag = 'smem constant byte address 0x4 - core index']
  #allocation1 [shape = 'u32[144,128]{1,0:T(1,128)}', space=vmem, size = 0x12000, scoped, tag = 'internal scratch']
  %s0 = inlined_call_operand.hbm [shape: f32[2,1024], index: 0, kind: input, shape index: {}]
  %s1 = inlined_call_operand.hbm [shape: f32[2,1024], index: 1, kind: input, shape index: {}]
  %s2 = inlined_call_operand.hbm [shape: f32[2,1024], index: 2, kind: output, shape index: {}]
  %s3 = sld [smem:[#allocation0]]
  $region26: #{tpu_custom_call.1} parent=0
    _
  %s5 = ssub.s32 1, %s3
  %s6 = scalar_select 0, %s5, %s3
  $region1: #{tpu_custom_call.1} parent=0
    #allocation2 [shape = 'u8[8192]{0}', space=vmem, size = 0x2000, scoped, tag = 'input window, operand 0, single buffered']
    #allocation3 [shape = 's32[1]{0}', space=sflag, size = 0x4, scoped, tag = 'scoped memory for tpu_custom_call.1']
    #allocation4 [shape = 's32[1]{0}', space=sflag, size = 0x4, scoped, tag = 'scoped memory for tpu_custom_call.1']
    #allocation5 [shape = 'u8[8192]{0}', space=vmem, size = 0x2000, scoped, tag = 'input window, operand 1, single buffered']
    #allocation6 [shape = 's32[1]{0}', space=sflag, size = 0x4, scoped, tag = 'scoped memory for tpu_custom_call.1']
    #allocation7 [shape = 'u8[8192]{0}', space=vmem, size = 0x2000, scoped, tag = 'output window, operand 0, single buffered']
    %7 = vsyncpa [#allocation3], 0
    %8 = vsyncpa [#allocation6], 0
    %9 = vsyncpa [#allocation4], 0
    // Predicated region
    $region2: #{tpu_custom_call.1} parent=1 // pred_check
      _
    $region3: #{tpu_custom_call.1} parent=1 // pred_check_branch
      %11 = sbr.rel (0) target = $region5
    $region4: #{tpu_custom_call.1} parent=1 // pred_region
      %s13 = ssub.s32 256, 256
      %14 = vsyncadd [#allocation3], %s13
      %s16 = sshll.u32 [#allocation2], 4
      %s17 = int_to_ptr.vmem [resolvable:$true] %s16
      %19 = dma.hbm_to_vmem [thread:$0]  %s0, 256, %s17, [#allocation3]
    $region5: #{tpu_custom_call.1} parent=1 // pred_fallthru
      _
    // Predicated region
    $region6: #{tpu_custom_call.1} parent=1 // pred_check
      _
    $region7: #{tpu_custom_call.1} parent=1 // pred_check_branch
      %21 = sbr.rel (0) target = $region9
    $region8: #{tpu_custom_call.1} parent=1 // pred_region
      %s23 = ssub.s32 256, 256
      %24 = vsyncadd [#allocation6], %s23
      %s26 = sshll.u32 [#allocation5], 4
      %s27 = int_to_ptr.vmem [resolvable:$true] %s26
      %29 = dma.hbm_to_vmem [thread:$0]  %s1, 256, %s27, [#allocation6]
    $region9: #{tpu_custom_call.1} parent=1 // pred_fallthru
      _
    // Predicated region
    $region10: #{tpu_custom_call.1} parent=1 // pred_check
      _
    $region11: #{tpu_custom_call.1} parent=1 // pred_check_branch
      %31 = sbr.rel (0) target = $region13
    $region12: #{tpu_custom_call.1} parent=1 // pred_region
      %32 = dma.done [#allocation3], 256
    $region13: #{tpu_custom_call.1} parent=1 // pred_fallthru
      _
    // Predicated region
    $region14: #{tpu_custom_call.1} parent=1 // pred_check
      _
    $region15: #{tpu_custom_call.1} parent=1 // pred_check_branch
      %34 = sbr.rel (0) target = $region17
    $region16: #{tpu_custom_call.1} parent=1 // pred_region
      %35 = dma.done [#allocation6], 256
    $region17: #{tpu_custom_call.1} parent=1 // pred_fallthru
      _
    %v36 = vld [vmem:[#allocation2] sm:$0xff]
    %v37 = vld [vmem:[#allocation2 + $0x8] sm:$0xff]
    %v38 = vld [vmem:[#allocation5] sm:$0xff]
    %v39 = vld [vmem:[#allocation5 + $0x8] sm:$0xff]
    %vm40 = vcmp.eq.f32.partialorder %v38, 0.0
    %vm41 = vcmp.eq.f32.partialorder %v39, 0.0
    %v42 = vsel %vm40, %v36, %v38
    %v43 = vsel %vm41, %v37, %v39
    %44 = vst [vmem:[#allocation7] sm:$0xff] %v42
    %45 = vst [vmem:[#allocation7 + $0x8] sm:$0xff] %v43
    // Predicated region
    $region18: #{tpu_custom_call.1} parent=1 // pred_check
      _
    $region19: #{tpu_custom_call.1} parent=1 // pred_check_branch
      %47 = sbr.rel (0) target = $region21
    $region20: #{tpu_custom_call.1} parent=1 // pred_region
      %s49 = ssub.s32 256, 256
      %50 = vsyncadd [#allocation4], %s49
      %s52 = sshll.u32 [#allocation7], 4
      %s53 = int_to_ptr.vmem [resolvable:$true] %s52
      %55 = dma.vmem_to_hbm [thread:$0]  %s53, 256, %s2, [#allocation4]
    $region21: #{tpu_custom_call.1} parent=1 // pred_fallthru
      _
    // Predicated region
    $region22: #{tpu_custom_call.1} parent=1 // pred_check
      _
    $region23: #{tpu_custom_call.1} parent=1 // pred_check_branch
      %57 = sbr.rel (0) target = $region25
    $region24: #{tpu_custom_call.1} parent=1 // pred_region
      %58 = dma.done [#allocation4], 256
    $region25: #{tpu_custom_call.1} parent=1 // pred_fallthru
      _
    %59 = vsyncpa [#allocation3], 1
    %60 = vsyncpa [#allocation6], 1
    %61 = vsyncpa [#allocation4], 1

</llo_original>
